<compile_context>
chip_gen: v5e
topology: v5e:2x2
jax: 0.10.0
libtpu: 0.0.40
codegen_flags: <defaults>
</compile_context>

<pallas_src>
import functools

import jax
import jax.numpy as jnp
from jax import lax
from jax.experimental import pallas as pl
from jax.experimental.pallas import tpu as pltpu


_NEG_BIG = -9e15          # matches the PyTorch masking constant
_MIB = 1024 * 1024


def _round_up(x, m):
    return ((x + m - 1) // m) * m


# ----------------------------- projection kernel -----------------------------

def _proj_kernel(h_ref, w_ref, a1_ref, a2_ref, wh_ref, f1_ref, f2_ref):
    # (tR, Fin) @ (Fin, Fout) on the MXU with f32 accumulation.
    wh = jnp.dot(h_ref[...], w_ref[...], preferred_element_type=jnp.float32)
    # Attention-vector projections on the VPU/XLU (frees the MXU entirely);
    # kept in f32 so the attention logits stay full precision.
    f1_ref[...] = jnp.sum(wh * a1_ref[...], axis=-1, keepdims=True)
    f2_ref[...] = jnp.sum(wh * a2_ref[...], axis=-1, keepdims=True)
    wh_ref[...] = wh.astype(wh_ref.dtype)      # bf16 store by default


# ----------------------------- attention kernel ------------------------------

def _attn_kernel(f1_ref, f2_ref, adj_ref, wh_ref, out_ref,
                 m_ref, l_ref, acc_ref, *, alpha, n_valid, n_pad, t_k,
                 wh_resident):
    k_idx = pl.program_id(1)

    @pl.when(k_idx == 0)
    def _init():
        m_ref[...] = jnp.full(m_ref.shape, -jnp.inf, jnp.float32)
        l_ref[...] = jnp.zeros(l_ref.shape, jnp.float32)
        acc_ref[...] = jnp.zeros(acc_ref.shape, jnp.float32)

    # e[i, j] = leaky_relu(f1[i] + f2[j]); f2 arrives lane-dense as (1, tK).
    e = f1_ref[...] + f2_ref[...]                          # (tQ, tK) f32
    e = jnp.where(e > 0, e, alpha * e)                     # LeakyReLU

    # int8 adjacency mask with an integer compare (no int8->f32 convert pass).
    att = jnp.where(adj_ref[...] > 0, e, jnp.float32(_NEG_BIG))
    if n_pad > n_valid:                                    # static (trace time)
        col = lax.broadcasted_iota(jnp.int32, att.shape, 1) + k_idx * t_k
        att = jnp.where(col < n_valid, att, -jnp.inf)      # padded key columns
    # NOTE: the first key tile (k==0) always contains column 0 < n_valid, so
    # the running max is finite before any all-(-inf) tile -> no exp NaN path.

    # Online softmax update.
    m_prev = m_ref[...]
    m_new = jnp.maximum(m_prev, jnp.max(att, axis=1, keepdims=True))
    corr = jnp.exp(m_prev - m_new)
    p = jnp.exp(att - m_new)
    l_ref[...] = corr * l_ref[...] + jnp.sum(p, axis=1, keepdims=True)

    if wh_resident:
        # Wh is VMEM-resident for the whole kernel (DMA'd once); slice the
        # key rows in-kernel.  Start is tile-aligned -> cheap aligned access.
        start = pl.multiple_of(k_idx * t_k, t_k)
        wh_tile = wh_ref[pl.ds(start, t_k), :]
    else:
        wh_tile = wh_ref[...]
    acc_ref[...] = corr * acc_ref[...] + jnp.dot(
        p.astype(wh_tile.dtype), wh_tile, preferred_element_type=jnp.float32)
    m_ref[...] = m_new

    @pl.when(k_idx == pl.num_programs(1) - 1)
    def _finalize():
        # Exact reciprocal: runs once per query tile on a (tQ,1) vector, so
        # the approximate (EUP) variant would buy nothing but precision loss.
        h_prime = acc_ref[...] * pl.reciprocal(l_ref[...], approx=False)
        out_ref[...] = jnp.where(h_prime > 0, h_prime,
                                 jnp.exp(h_prime) - 1.0).astype(out_ref.dtype)


# --------------------------------- wrapper ------------------------------------

def prepare_adjacency(adj, n_pad):
    """(adj > 0) as a padded int8 mask.  Compute once per graph and reuse so
    the N^2 cast/pad does not re-run on every forward call."""
    n = adj.shape[0]
    return jnp.pad((adj > 0).astype(jnp.int8), ((0, n_pad - n), (0, n_pad - n)))


def gat_layer(h, adj, W, a, *, alpha, wh_dtype=jnp.bfloat16):
    """Pallas GAT layer forward.

    h:(N,Fin), adj:(N,N) float mask OR pre-packed int8 (n_pad,n_pad),
    W:(Fin,Fout), a:(2*Fout,1).
    """
    N, Fin = h.shape
    Fout = W.shape[1]

    # Lane-dense padding: feature dims to multiples of 128; nodes to a multiple
    # of the key tile (keeps key tiles large -> fewer grid steps / big DMAs).
    fin_p = _round_up(Fin, 128)
    fout_p = _round_up(Fout, 128)
    t_k = 512
    n_pad = _round_up(N, t_k)

    wh_itemsize = jnp.dtype(wh_dtype).itemsize
    wh_bytes = n_pad * fout_p * wh_itemsize

    # Wh resident in VMEM when it fits (one DMA total instead of a re-stream
    # per (q,k) tile); otherwise stream key tiles with a larger query tile so
    # the dominant Wh HBM traffic scales as 1/t_q.
    resident_budget = 36 * _MIB                       # conservative across gens
    wh_resident = (2 * wh_bytes) <= resident_budget   # 2x: worst-case buffering
    t_q = 128 if wh_resident else 256
    # v7x megacore: keep >= 2 query blocks so the "parallel" axis can shard.
    assert n_pad // t_q >= 2

    h_p = jnp.pad(h, ((0, n_pad - N), (0, fin_p - Fin))).astype(jnp.float32)
    w_p = jnp.pad(W, ((0, fin_p - Fin), (0, fout_p - Fout))).astype(jnp.float32)
    a1_row = jnp.pad(a[:Fout, 0], (0, fout_p - Fout)).reshape(1, fout_p)
    a1_row = a1_row.astype(jnp.float32)
    a2_row = jnp.pad(a[Fout:, 0], (0, fout_p - Fout)).reshape(1, fout_p)
    a2_row = a2_row.astype(jnp.float32)

    if adj.dtype == jnp.int8 and adj.shape == (n_pad, n_pad):
        adj_i8 = adj                      # pre-packed once per graph (preferred)
    else:
        adj_i8 = prepare_adjacency(adj, n_pad)

    # Per-generation safe VMEM limits (capped at 48 MiB: safe on v7x's 64 MiB).
    t_r = 512                                           # projection row tile
    proj_vmem = (2 * t_r * fin_p * 4 + 2 * fin_p * fout_p * 4
                 + 2 * t_r * fout_p * wh_itemsize + 8 * t_r * 4
                 + 4 * fout_p * 4)
    vmem_proj = int(min(48 * _MIB, max(32 * _MIB, 2 * proj_vmem)))
    attn_vmem = ((wh_bytes * 2 if wh_resident else 2 * t_k * fout_p * wh_itemsize)
                 + 2 * t_q * t_k                    # int8 adj tile, dbl-buffered
                 + 2 * t_q * 4 + 2 * t_k * 4        # f1 / f2
                 + 2 * t_q * fout_p * 4             # out block
                 + t_q * fout_p * 4 + 2 * t_q * 4)  # acc + m + l scratch
    vmem_attn = int(min(48 * _MIB, max(32 * _MIB, 2 * attn_vmem)))

    # --- kernel 1: projection + fused attention-vector projections ---
    wh, f1, f2 = pl.pallas_call(
        _proj_kernel,
        out_shape=(
            jax.ShapeDtypeStruct((n_pad, fout_p), wh_dtype),
            jax.ShapeDtypeStruct((n_pad, 1), jnp.float32),
            jax.ShapeDtypeStruct((n_pad, 1), jnp.float32),
        ),
        grid=(n_pad // t_r,),
        in_specs=[
            pl.BlockSpec((t_r, fin_p), lambda i: (i, 0)),
            pl.BlockSpec((fin_p, fout_p), lambda i: (0, 0)),
            pl.BlockSpec((1, fout_p), lambda i: (0, 0)),
            pl.BlockSpec((1, fout_p), lambda i: (0, 0)),
        ],
        out_specs=(
            pl.BlockSpec((t_r, fout_p), lambda i: (i, 0)),
            pl.BlockSpec((t_r, 1), lambda i: (i, 0)),
            pl.BlockSpec((t_r, 1), lambda i: (i, 0)),
        ),
        compiler_params=pltpu.CompilerParams(
            dimension_semantics=("parallel",),
            vmem_limit_bytes=vmem_proj),
    )(h_p, w_p, a1_row, a2_row)

    # One tiny relayout of f2 to a lane-dense (1, n_pad) row in the wrapper so
    # the attention inner loop never transposes a lane-width-1 vector.
    f2_row = f2.reshape(1, n_pad)

    # --- kernel 2: tiled attention with online softmax ---
    attn_kernel = functools.partial(
        _attn_kernel, alpha=float(alpha), n_valid=N, n_pad=n_pad, t_k=t_k,
        wh_resident=wh_resident)

    wh_spec = (pl.BlockSpec((n_pad, fout_p), lambda q, k: (0, 0))  # resident
               if wh_resident else
               pl.BlockSpec((t_k, fout_p), lambda q, k: (k, 0)))   # streamed

    out_p = pl.pallas_call(
        attn_kernel,
        out_shape=jax.ShapeDtypeStruct((n_pad, fout_p), jnp.float32),
        grid=(n_pad // t_q, n_pad // t_k),
        in_specs=[
            pl.BlockSpec((t_q, 1), lambda q, k: (q, 0)),        # f1 (column)
            pl.BlockSpec((1, t_k), lambda q, k: (0, k)),        # f2 (lane-dense)
            pl.BlockSpec((t_q, t_k), lambda q, k: (q, k)),      # adj tile (int8)
            wh_spec,                                            # Wh (bf16)
        ],
        out_specs=pl.BlockSpec((t_q, fout_p), lambda q, k: (q, 0)),
        scratch_shapes=[
            pltpu.VMEM((t_q, 1), jnp.float32),        # running row max
            pltpu.VMEM((t_q, 1), jnp.float32),        # running row sum
            pltpu.VMEM((t_q, fout_p), jnp.float32),   # output accumulator
        ],
        compiler_params=pltpu.CompilerParams(
            dimension_semantics=("parallel", "arbitrary"),
            vmem_limit_bytes=vmem_attn),
    )(f1, f2_row, adj_i8, wh)

    return out_p[:N, :Fout]


# --------------------------------- testing ------------------------------------

def _xavier_uniform(key, shape, gain):
    fan_in, fan_out = shape[0], shape[1]
    bound = gain * jnp.sqrt(6.0 / (fan_in + fan_out))
    return jax.random.uniform(key, shape, jnp.float32, -bound, bound)


def _reference(h, adj, W, a, alpha):
    """Pure-JAX reference mirroring the PyTorch forward (eval mode)."""
    hp = jax.lax.Precision.HIGHEST
    Fout = W.shape[1]
    Wh = jnp.dot(h, W, precision=hp)
    f1 = jnp.dot(Wh, a[:Fout, :], precision=hp)
    f2 = jnp.dot(Wh, a[Fout:, :], precision=hp)
    e = f1 + f2.T
    e = jnp.where(e > 0, e, alpha * e)
    att = jnp.where(adj > 0, e, _NEG_BIG)
    att = jax.nn.softmax(att, axis=1)
    h_prime = jnp.dot(att, Wh, precision=hp)
    return jnp.where(h_prime > 0, h_prime, jnp.exp(h_prime) - 1.0)


if __name__ == "__main__":
    N, F_IN, F_OUT = 8, 16, 32
    ALPHA = 0.2  # LeakyReLU negative slope

    key = jax.random.PRNGKey(0)
    k_h, k_adj, k_w, k_a = jax.random.split(key, 4)

    h = jax.random.normal(k_h, (N, F_IN), jnp.float32)
    # Dense random adjacency with self-loops (values in {0,1}).
    adj = (jax.random.uniform(k_adj, (N, N)) > 0.5).astype(jnp.float32)
    adj = jnp.maximum(adj, jnp.eye(N, dtype=jnp.float32))

    # Deterministic parameter init matching nn.init.xavier_uniform_(gain=1.414).
    W = _xavier_uniform(k_w, (F_IN, F_OUT), gain=1.414)
    a = _xavier_uniform(k_a, (2 * F_OUT, 1), gain=1.414)

    ref = _reference(h, adj, W, a, ALPHA)

    # Hoisted once-per-graph adjacency packing (int8, padded).
    n_pad = _round_up(N, 512)
    adj_packed = prepare_adjacency(adj, n_pad)

    # Default path: bf16-stored Wh (halved HBM traffic, f32 accumulation).
    out = jax.block_until_ready(gat_layer(h, adj_packed, W, a, alpha=ALPHA))
    assert out.shape == (N, F_OUT)
    assert jnp.allclose(out, ref, atol=2e-2, rtol=2e-2), "bf16 path mismatch"

    # f32 Wh path (exercises the raw-adjacency branch too): tight agreement.
    out32 = jax.block_until_ready(
        gat_layer(h, adj, W, a, alpha=ALPHA, wh_dtype=jnp.float32))
    assert jnp.allclose(out32, ref, atol=1e-3, rtol=1e-3), "f32 path mismatch"

    print("KERNEL_OK")
</pallas_src>

<mosaic_0001>
module attributes {stable_mosaic.version = 11 : i64} {
  func.func @_proj_kernel(%arg0: i32, %arg1: memref<512x128xf32, #tpu.memory_space<vmem>>, %arg2: memref<128x128xf32, #tpu.memory_space<vmem>>, %arg3: memref<1x128xf32, #tpu.memory_space<vmem>>, %arg4: memref<1x128xf32, #tpu.memory_space<vmem>>, %arg5: memref<512x128xbf16, #tpu.memory_space<vmem>>, %arg6: memref<512x1xf32, #tpu.memory_space<vmem>>, %arg7: memref<512x1xf32, #tpu.memory_space<vmem>>) attributes {dimension_semantics = [#tpu.dimension_semantics<parallel>], iteration_bounds = array<i64: 1>, scalar_prefetch = 0 : i64, scratch_operands = 0 : i64, tpu.core_type = #tpu.core_type<tc>, window_params = [{transform_indices = @transform_0, window_bounds = array<i64: 512, 128>}, {pipeline_mode = #tpu.pipeline_mode<synchronous>, transform_indices = @transform_1, window_bounds = array<i64: 128, 128>}, {pipeline_mode = #tpu.pipeline_mode<synchronous>, transform_indices = @transform_2, window_bounds = array<i64: 1, 128>}, {pipeline_mode = #tpu.pipeline_mode<synchronous>, transform_indices = @transform_3, window_bounds = array<i64: 1, 128>}, {transform_indices = @transform_4, window_bounds = array<i64: 512, 128>}, {transform_indices = @transform_5, window_bounds = array<i64: 512, 1>}, {transform_indices = @transform_6, window_bounds = array<i64: 512, 1>}]} {
    %c0 = arith.constant 0 : index
    %c0_0 = arith.constant 0 : index
    %0 = vector.load %arg1[%c0, %c0_0] : memref<512x128xf32, #tpu.memory_space<vmem>>, vector<512x128xf32>
    %c0_1 = arith.constant 0 : index
    %c0_2 = arith.constant 0 : index
    %1 = vector.load %arg2[%c0_1, %c0_2] : memref<128x128xf32, #tpu.memory_space<vmem>>, vector<128x128xf32>
    %cst = arith.constant dense<0.000000e+00> : vector<512x128xf32>
    %2 = tpu.matmul %0, %1, %cst {dimension_numbers = #tpu.dot_dimension_numbers<[1], [0], [0], [1], [0, 0, 1, 1], [], []>} : vector<512x128xf32>, vector<128x128xf32>, vector<512x128xf32> -> vector<512x128xf32>
    %c0_3 = arith.constant 0 : index
    %c0_4 = arith.constant 0 : index
    %3 = vector.load %arg3[%c0_3, %c0_4] : memref<1x128xf32, #tpu.memory_space<vmem>>, vector<1x128xf32>
    %4 = vector.broadcast %3 : vector<1x128xf32> to vector<512x128xf32>
    %5 = arith.mulf %2, %4 : vector<512x128xf32>
    %cst_5 = arith.constant dense<0.000000e+00> : vector<512xf32>
    %6 = vector.multi_reduction <add>, %5, %cst_5 [1] : vector<512x128xf32> to vector<512xf32>
    %7 = vector.shape_cast %6 : vector<512xf32> to vector<512x1xf32>
    %c0_6 = arith.constant 0 : index
    %c0_7 = arith.constant 0 : index
    %8 = vector.load %arg6[%c0_6, %c0_7] : memref<512x1xf32, #tpu.memory_space<vmem>>, vector<512x1xf32>
    tpu.vector_store %arg6[%c0_6, %c0_7], %7 {strides = array<i32>} : memref<512x1xf32, #tpu.memory_space<vmem>>, vector<512x1xf32>,
    %c0_8 = arith.constant 0 : index
    %c0_9 = arith.constant 0 : index
    %9 = vector.load %arg4[%c0_8, %c0_9] : memref<1x128xf32, #tpu.memory_space<vmem>>, vector<1x128xf32>
    %10 = vector.broadcast %9 : vector<1x128xf32> to vector<512x128xf32>
    %11 = arith.mulf %2, %10 : vector<512x128xf32>
    %cst_10 = arith.constant dense<0.000000e+00> : vector<512xf32>
    %12 = vector.multi_reduction <add>, %11, %cst_10 [1] : vector<512x128xf32> to vector<512xf32>
    %13 = vector.shape_cast %12 : vector<512xf32> to vector<512x1xf32>
    %c0_11 = arith.constant 0 : index
    %c0_12 = arith.constant 0 : index
    %14 = vector.load %arg7[%c0_11, %c0_12] : memref<512x1xf32, #tpu.memory_space<vmem>>, vector<512x1xf32>
    tpu.vector_store %arg7[%c0_11, %c0_12], %13 {strides = array<i32>} : memref<512x1xf32, #tpu.memory_space<vmem>>, vector<512x1xf32>,
    %15 = arith.truncf %2 : vector<512x128xf32> to vector<512x128xbf16>
    %c0_13 = arith.constant 0 : index
    %c0_14 = arith.constant 0 : index
    %16 = vector.load %arg5[%c0_13, %c0_14] : memref<512x128xbf16, #tpu.memory_space<vmem>>, vector<512x128xbf16>
    tpu.vector_store %arg5[%c0_13, %c0_14], %15 {strides = array<i32>} : memref<512x128xbf16, #tpu.memory_space<vmem>>, vector<512x128xbf16>,
    return
  }
  func.func @transform_0(%arg0: i32) -> (i32, i32) {
    %c0_i32 = arith.constant 0 : i32
    %c0_i32_0 = arith.constant 0 : i32
    return %arg0, %c0_i32 : i32, i32
  }
  func.func @transform_1(%arg0: i32) -> (i32, i32) {
    %c0_i32 = arith.constant 0 : i32
    %c0_i32_0 = arith.constant 0 : i32
    %c0_i32_1 = arith.constant 0 : i32
    return %c0_i32, %c0_i32_0 : i32, i32
  }
  func.func @transform_2(%arg0: i32) -> (i32, i32) {
    %c0_i32 = arith.constant 0 : i32
    %c0_i32_0 = arith.constant 0 : i32
    %c0_i32_1 = arith.constant 0 : i32
    return %c0_i32, %c0_i32_0 : i32, i32
  }
  func.func @transform_3(%arg0: i32) -> (i32, i32) {
    %c0_i32 = arith.constant 0 : i32
    %c0_i32_0 = arith.constant 0 : i32
    %c0_i32_1 = arith.constant 0 : i32
    return %c0_i32, %c0_i32_0 : i32, i32
  }
  func.func @transform_4(%arg0: i32) -> (i32, i32) {
    %c0_i32 = arith.constant 0 : i32
    %c0_i32_0 = arith.constant 0 : i32
    return %arg0, %c0_i32 : i32, i32
  }
  func.func @transform_5(%arg0: i32) -> (i32, i32) {
    %c0_i32 = arith.constant 0 : i32
    %c0_i32_0 = arith.constant 0 : i32
    return %arg0, %c0_i32 : i32, i32
  }
  func.func @transform_6(%arg0: i32) -> (i32, i32) {
    %c0_i32 = arith.constant 0 : i32
    %c0_i32_0 = arith.constant 0 : i32
    return %arg0, %c0_i32 : i32, i32
  }
}

</mosaic_0001>

<llo_original>
// kernel: tpu_custom_call.1
$region0: #{tpu_custom_call.1}
  #allocation0 [shape = 'u32[]', space=smem, size = 0x4, offset = 0x4, fixed_abs, tag = 'smem constant byte address 0x4 - core index']
  #allocation1 [shape = 'u32[72,128]{1,0:T(1,128)}', space=vmem, size = 0x9000, scoped, tag = 'internal scratch']
  %s0 = inlined_call_operand.hbm [shape: f32[512,128], index: 0, kind: input, shape index: {}]
  %s1 = inlined_call_operand.hbm [shape: f32[128,128], index: 1, kind: input, shape index: {}]
  %s2 = inlined_call_operand.vmem [shape: f32[1,128], index: 2, kind: input, shape index: {}]
  %s3 = inlined_call_operand.vmem [shape: f32[1,128], index: 3, kind: input, shape index: {}]
  %s4 = inlined_call_operand.hbm [shape: bf16[512,128], index: 4, kind: output, shape index: {0}]
  %s5 = inlined_call_operand.vmem [shape: f32[512,1], index: 5, kind: output, shape index: {1}]
  %s6 = inlined_call_operand.vmem [shape: f32[512,1], index: 6, kind: output, shape index: {2}]
  %7 = xla_tuple %s4, %s5, %s6
  %s8 = sld [smem:[#allocation0]]
  $region50: #{tpu_custom_call.1} parent=0
    _
  %s10 = ssub.s32 1, %s8
  %s11 = scalar_select 0, %s10, %s8
  $region1: #{tpu_custom_call.1} parent=0
    #allocation2 [shape = 'u8[262144]{0}', space=vmem, size = 0x40000, scoped, tag = 'input window, operand 0, single buffered']
    #allocation3 [shape = 's32[1]{0}', space=sflag, size = 0x4, scoped, tag = 'scoped memory for tpu_custom_call.1']
    #allocation4 [shape = 's32[1]{0}', space=sflag, size = 0x4, scoped, tag = 'scoped memory for tpu_custom_call.1']
    #allocation5 [shape = 'u8[65536]{0}', space=vmem, size = 0x10000, scoped, tag = 'input window, operand 1, single buffered']
    #allocation6 [shape = 's32[1]{0}', space=sflag, size = 0x4, scoped, tag = 'scoped memory for tpu_custom_call.1']
    #allocation7 [shape = 'u8[131072]{0}', space=vmem, size = 0x20000, scoped, tag = 'output window, operand 0, single buffered']
    %12 = vsyncpa [#allocation3], 0
    %13 = vsyncpa [#allocation6], 0
    %14 = vsyncpa [#allocation4], 0
    // Predicated region
    $region2: #{tpu_custom_call.1} parent=1 // pred_check
      _
    $region3: #{tpu_custom_call.1} parent=1 // pred_check_branch
      %16 = sbr.rel (0) target = $region5
    $region4: #{tpu_custom_call.1} parent=1 // pred_region
      %18 = vsyncadd [#allocation3], 0
      %s19 = sshll.u32 %s0, 4
      %s20 = int_to_ptr.hbm [resolvable:$true] %s19
      %s21 = sshll.u32 [#allocation2], 4
      %s22 = int_to_ptr.vmem [resolvable:$true] %s21
      %27 = dma.hbm_to_vmem [thread:$0]  %s20, 8192, %s22, [#allocation3], 128, 128, 8
    $region5: #{tpu_custom_call.1} parent=1 // pred_fallthru
      _
    // Predicated region
    $region6: #{tpu_custom_call.1} parent=1 // pred_check
      _
    $region7: #{tpu_custom_call.1} parent=1 // pred_check_branch
      %29 = sbr.rel (0) target = $region9
    $region8: #{tpu_custom_call.1} parent=1 // pred_region
      %31 = vsyncadd [#allocation6], 0
      %s32 = sshll.u32 %s1, 4
      %s33 = int_to_ptr.hbm [resolvable:$true] %s32
      %s34 = sshll.u32 [#allocation5], 4
      %s35 = int_to_ptr.vmem [resolvable:$true] %s34
      %40 = dma.hbm_to_vmem [thread:$0]  %s33, 2048, %s35, [#allocation6], 128, 128, 8
    $region9: #{tpu_custom_call.1} parent=1 // pred_fallthru
      _
    // Predicated region
    $region10: #{tpu_custom_call.1} parent=1 // pred_check
      _
    $region11: #{tpu_custom_call.1} parent=1 // pred_check_branch
      %42 = sbr.rel (0) target = $region13
    $region12: #{tpu_custom_call.1} parent=1 // pred_region
      _
    $region13: #{tpu_custom_call.1} parent=1 // pred_fallthru
      _
    // Predicated region
    $region14: #{tpu_custom_call.1} parent=1 // pred_check
      _
    $region15: #{tpu_custom_call.1} parent=1 // pred_check_branch
      %44 = sbr.rel (0) target = $region17
    $region16: #{tpu_custom_call.1} parent=1 // pred_region
      _
    $region17: #{tpu_custom_call.1} parent=1 // pred_fallthru
      _
    // Predicated region
    $region18: #{tpu_custom_call.1} parent=1 // pred_check
      _
    $region19: #{tpu_custom_call.1} parent=1 // pred_check_branch
      %46 = sbr.rel (0) target = $region21
    $region20: #{tpu_custom_call.1} parent=1 // pred_region
      %48 = dma.done [#allocation3], 8192
    $region21: #{tpu_custom_call.1} parent=1 // pred_fallthru
      _
    // Predicated region
    $region22: #{tpu_custom_call.1} parent=1 // pred_check
      _
    $region23: #{tpu_custom_call.1} parent=1 // pred_check_branch
      %50 = sbr.rel (0) target = $region25
    $region24: #{tpu_custom_call.1} parent=1 // pred_region
      %52 = dma.done [#allocation6], 2048
    $region25: #{tpu_custom_call.1} parent=1 // pred_fallthru
      _
    %v53 = vld [vmem:[#allocation2] sm:$0xff]
    %v54 = vld [vmem:[#allocation2 + $0x8] sm:$0xff]
    %v55 = vld [vmem:[#allocation2 + $0x10] sm:$0xff]
    %v56 = vld [vmem:[#allocation2 + $0x18] sm:$0xff]
    %v57 = vld [vmem:[#allocation2 + $0x20] sm:$0xff]
    %v58 = vld [vmem:[#allocation2 + $0x28] sm:$0xff]
    %v59 = vld [vmem:[#allocation2 + $0x30] sm:$0xff]
    %v60 = vld [vmem:[#allocation2 + $0x38] sm:$0xff]
    %v61 = vld [vmem:[#allocation2 + $0x40] sm:$0xff]
    %v62 = vld [vmem:[#allocation2 + $0x48] sm:$0xff]
    %v63 = vld [vmem:[#allocation2 + $0x50] sm:$0xff]
    %v64 = vld [vmem:[#allocation2 + $0x58] sm:$0xff]
    %v65 = vld [vmem:[#allocation2 + $0x60] sm:$0xff]
    %v66 = vld [vmem:[#allocation2 + $0x68] sm:$0xff]
    %v67 = vld [vmem:[#allocation2 + $0x70] sm:$0xff]
    %v68 = vld [vmem:[#allocation2 + $0x78] sm:$0xff]
    %v69 = vld [vmem:[#allocation2 + $0x80] sm:$0xff]
    %v70 = vld [vmem:[#allocation2 + $0x88] sm:$0xff]
    %v71 = vld [vmem:[#allocation2 + $0x90] sm:$0xff]
    %v72 = vld [vmem:[#allocation2 + $0x98] sm:$0xff]
    %v73 = vld [vmem:[#allocation2 + $0xa0] sm:$0xff]
    %v74 = vld [vmem:[#allocation2 + $0xa8] sm:$0xff]
    %v75 = vld [vmem:[#allocation2 + $0xb0] sm:$0xff]
    %v76 = vld [vmem:[#allocation2 + $0xb8] sm:$0xff]
    %v77 = vld [vmem:[#allocation2 + $0xc0] sm:$0xff]
    %v78 = vld [vmem:[#allocation2 + $0xc8] sm:$0xff]
    %v79 = vld [vmem:[#allocation2 + $0xd0] sm:$0xff]
    %v80 = vld [vmem:[#allocation2 + $0xd8] sm:$0xff]
    %v81 = vld [vmem:[#allocation2 + $0xe0] sm:$0xff]
    %v82 = vld [vmem:[#allocation2 + $0xe8] sm:$0xff]
    %v83 = vld [vmem:[#allocation2 + $0xf0] sm:$0xff]
    %v84 = vld [vmem:[#allocation2 + $0xf8] sm:$0xff]
    %v85 = vld [vmem:[#allocation2 + $0x100] sm:$0xff]
    %v86 = vld [vmem:[#allocation2 + $0x108] sm:$0xff]
    %v87 = vld [vmem:[#allocation2 + $0x110] sm:$0xff]
    %v88 = vld [vmem:[#allocation2 + $0x118] sm:$0xff]
    %v89 = vld [vmem:[#allocation2 + $0x120] sm:$0xff]
    %v90 = vld [vmem:[#allocation2 + $0x128] sm:$0xff]
    %v91 = vld [vmem:[#allocation2 + $0x130] sm:$0xff]
    %v92 = vld [vmem:[#allocation2 + $0x138] sm:$0xff]
    %v93 = vld [vmem:[#allocation2 + $0x140] sm:$0xff]
    %v94 = vld [vmem:[#allocation2 + $0x148] sm:$0xff]
    %v95 = vld [vmem:[#allocation2 + $0x150] sm:$0xff]
    %v96 = vld [vmem:[#allocation2 + $0x158] sm:$0xff]
    %v97 = vld [vmem:[#allocation2 + $0x160] sm:$0xff]
    %v98 = vld [vmem:[#allocation2 + $0x168] sm:$0xff]
    %v99 = vld [vmem:[#allocation2 + $0x170] sm:$0xff]
    %v100 = vld [vmem:[#allocation2 + $0x178] sm:$0xff]
    %v101 = vld [vmem:[#allocation2 + $0x180] sm:$0xff]
    %v102 = vld [vmem:[#allocation2 + $0x188] sm:$0xff]
    %v103 = vld [vmem:[#allocation2 + $0x190] sm:$0xff]
    %v104 = vld [vmem:[#allocation2 + $0x198] sm:$0xff]
    %v105 = vld [vmem:[#allocation2 + $0x1a0] sm:$0xff]
    %v106 = vld [vmem:[#allocation2 + $0x1a8] sm:$0xff]
    %v107 = vld [vmem:[#allocation2 + $0x1b0] sm:$0xff]
    %v108 = vld [vmem:[#allocation2 + $0x1b8] sm:$0xff]
    %v109 = vld [vmem:[#allocation2 + $0x1c0] sm:$0xff]
    %v110 = vld [vmem:[#allocation2 + $0x1c8] sm:$0xff]
    %v111 = vld [vmem:[#allocation2 + $0x1d0] sm:$0xff]
    %v112 = vld [vmem:[#allocation2 + $0x1d8] sm:$0xff]
    %v113 = vld [vmem:[#allocation2 + $0x1e0] sm:$0xff]
    %v114 = vld [vmem:[#allocation2 + $0x1e8] sm:$0xff]
    %v115 = vld [vmem:[#allocation2 + $0x1f0] sm:$0xff]
    %v116 = vld [vmem:[#allocation2 + $0x1f8] sm:$0xff]
    %v117 = vld [vmem:[#allocation5] sm:$0xff]
    %v118 = vld [vmem:[#allocation5 + $0x8] sm:$0xff]
    %v119 = vld [vmem:[#allocation5 + $0x10] sm:$0xff]
    %v120 = vld [vmem:[#allocation5 + $0x18] sm:$0xff]
    %v121 = vld [vmem:[#allocation5 + $0x20] sm:$0xff]
    %v122 = vld [vmem:[#allocation5 + $0x28] sm:$0xff]
    %v123 = vld [vmem:[#allocation5 + $0x30] sm:$0xff]
    %v124 = vld [vmem:[#allocation5 + $0x38] sm:$0xff]
    %v125 = vld [vmem:[#allocation5 + $0x40] sm:$0xff]
    %v126 = vld [vmem:[#allocation5 + $0x48] sm:$0xff]
    %v127 = vld [vmem:[#allocation5 + $0x50] sm:$0xff]
    %v128 = vld [vmem:[#allocation5 + $0x58] sm:$0xff]
    %v129 = vld [vmem:[#allocation5 + $0x60] sm:$0xff]
    %v130 = vld [vmem:[#allocation5 + $0x68] sm:$0xff]
    %v131 = vld [vmem:[#allocation5 + $0x70] sm:$0xff]
    %v132 = vld [vmem:[#allocation5 + $0x78] sm:$0xff]
    %133 = vmatpush.msra.mxu0 %v132
    %134 = vmatpush.msra.mxu0 %v131
    %135 = vmatpush.msra.mxu0 %v130
    %136 = vmatpush.msra.mxu0 %v129
    %137 = vmatpush.msra.mxu0 %v128
    %138 = vmatpush.msra.mxu0 %v127
    %139 = vmatpush.msra.mxu0 %v126
    %140 = vmatpush.msra.mxu0 %v125
    %141 = vmatpush.msra.mxu0 %v124
    %142 = vmatpush.msra.mxu0 %v123
    %143 = vmatpush.msra.mxu0 %v122
    %144 = vmatpush.msra.mxu0 %v121
    %145 = vmatpush.msra.mxu0 %v120
    %146 = vmatpush.msra.mxu0 %v119
    %147 = vmatpush.msra.mxu0 %v118
    %148 = vmatpush.msra.mxu0 %v117
    %149 = vmatmul.f32.gmra.mxu0 %v53
    %v150 = vpop.f32.mrf.mxu0
    %v151 = vadd.f32 0.0, %v150
    %152 = vmatmul.f32.gmra.mxu0 %v54
    %v153 = vpop.f32.mrf.mxu0
    %v154 = vadd.f32 0.0, %v153
    %155 = vmatmul.f32.gmra.mxu0 %v55
    %v156 = vpop.f32.mrf.mxu0
    %v157 = vadd.f32 0.0, %v156
    %158 = vmatmul.f32.gmra.mxu0 %v56
    %v159 = vpop.f32.mrf.mxu0
    %v160 = vadd.f32 0.0, %v159
    %161 = vmatmul.f32.gmra.mxu0 %v57
    %v162 = vpop.f32.mrf.mxu0
    %v163 = vadd.f32 0.0, %v162
    %164 = vmatmul.f32.gmra.mxu0 %v58
    %v165 = vpop.f32.mrf.mxu0
    %v166 = vadd.f32 0.0, %v165
    %167 = vmatmul.f32.gmra.mxu0 %v59
    %v168 = vpop.f32.mrf.mxu0
    %v169 = vadd.f32 0.0, %v168
    %170 = vmatmul.f32.gmra.mxu0 %v60
    %v171 = vpop.f32.mrf.mxu0
    %v172 = vadd.f32 0.0, %v171
    %173 = vmatmul.f32.gmra.mxu0 %v61
    %v174 = vpop.f32.mrf.mxu0
    %v175 = vadd.f32 0.0, %v174
    %176 = vmatmul.f32.gmra.mxu0 %v62
    %v177 = vpop.f32.mrf.mxu0
    %v178 = vadd.f32 0.0, %v177
    %179 = vmatmul.f32.gmra.mxu0 %v63
    %v180 = vpop.f32.mrf.mxu0
    %v181 = vadd.f32 0.0, %v180
    %182 = vmatmul.f32.gmra.mxu0 %v64
    %v183 = vpop.f32.mrf.mxu0
    %v184 = vadd.f32 0.0, %v183
    %185 = vmatmul.f32.gmra.mxu0 %v65
    %v186 = vpop.f32.mrf.mxu0
    %v187 = vadd.f32 0.0, %v186
    %188 = vmatmul.f32.gmra.mxu0 %v66
    %v189 = vpop.f32.mrf.mxu0
    %v190 = vadd.f32 0.0, %v189
    %191 = vmatmul.f32.gmra.mxu0 %v67
    %v192 = vpop.f32.mrf.mxu0
    %v193 = vadd.f32 0.0, %v192
    %194 = vmatmul.f32.gmra.mxu0 %v68
    %v195 = vpop.f32.mrf.mxu0
    %v196 = vadd.f32 0.0, %v195
    %197 = vmatmul.f32.gmra.mxu0 %v69
    %v198 = vpop.f32.mrf.mxu0
    %v199 = vadd.f32 0.0, %v198
    %200 = vmatmul.f32.gmra.mxu0 %v70
    %v201 = vpop.f32.mrf.mxu0
    %v202 = vadd.f32 0.0, %v201
    %203 = vmatmul.f32.gmra.mxu0 %v71
    %v204 = vpop.f32.mrf.mxu0
    %v205 = vadd.f32 0.0, %v204
    %206 = vmatmul.f32.gmra.mxu0 %v72
    %v207 = vpop.f32.mrf.mxu0
    %v208 = vadd.f32 0.0, %v207
    %209 = vmatmul.f32.gmra.mxu0 %v73
    %v210 = vpop.f32.mrf.mxu0
    %v211 = vadd.f32 0.0, %v210
    %212 = vmatmul.f32.gmra.mxu0 %v74
    %v213 = vpop.f32.mrf.mxu0
    %v214 = vadd.f32 0.0, %v213
    %215 = vmatmul.f32.gmra.mxu0 %v75
    %v216 = vpop.f32.mrf.mxu0
    %v217 = vadd.f32 0.0, %v216
    %218 = vmatmul.f32.gmra.mxu0 %v76
    %v219 = vpop.f32.mrf.mxu0
    %v220 = vadd.f32 0.0, %v219
    %221 = vmatmul.f32.gmra.mxu0 %v77
    %v222 = vpop.f32.mrf.mxu0
    %v223 = vadd.f32 0.0, %v222
    %224 = vmatmul.f32.gmra.mxu0 %v78
    %v225 = vpop.f32.mrf.mxu0
    %v226 = vadd.f32 0.0, %v225
    %227 = vmatmul.f32.gmra.mxu0 %v79
    %v228 = vpop.f32.mrf.mxu0
    %v229 = vadd.f32 0.0, %v228
    %230 = vmatmul.f32.gmra.mxu0 %v80
    %v231 = vpop.f32.mrf.mxu0
    %v232 = vadd.f32 0.0, %v231
    %233 = vmatmul.f32.gmra.mxu0 %v81
    %v234 = vpop.f32.mrf.mxu0
    %v235 = vadd.f32 0.0, %v234
    %236 = vmatmul.f32.gmra.mxu0 %v82
    %v237 = vpop.f32.mrf.mxu0
    %v238 = vadd.f32 0.0, %v237
    %239 = vmatmul.f32.gmra.mxu0 %v83
    %v240 = vpop.f32.mrf.mxu0
    %v241 = vadd.f32 0.0, %v240
    %242 = vmatmul.f32.gmra.mxu0 %v84
    %v243 = vpop.f32.mrf.mxu0
    %v244 = vadd.f32 0.0, %v243
    %245 = vmatmul.f32.gmra.mxu0 %v85
    %v246 = vpop.f32.mrf.mxu0
    %v247 = vadd.f32 0.0, %v246
    %248 = vmatmul.f32.gmra.mxu0 %v86
    %v249 = vpop.f32.mrf.mxu0
    %v250 = vadd.f32 0.0, %v249
    %251 = vmatmul.f32.gmra.mxu0 %v87
    %v252 = vpop.f32.mrf.mxu0
    %v253 = vadd.f32 0.0, %v252
    %254 = vmatmul.f32.gmra.mxu0 %v88
    %v255 = vpop.f32.mrf.mxu0
    %v256 = vadd.f32 0.0, %v255
    %257 = vmatmul.f32.gmra.mxu0 %v89
    %v258 = vpop.f32.mrf.mxu0
    %v259 = vadd.f32 0.0, %v258
    %260 = vmatmul.f32.gmra.mxu0 %v90
    %v261 = vpop.f32.mrf.mxu0
    %v262 = vadd.f32 0.0, %v261
    %263 = vmatmul.f32.gmra.mxu0 %v91
    %v264 = vpop.f32.mrf.mxu0
    %v265 = vadd.f32 0.0, %v264
    %266 = vmatmul.f32.gmra.mxu0 %v92
    %v267 = vpop.f32.mrf.mxu0
    %v268 = vadd.f32 0.0, %v267
    %269 = vmatmul.f32.gmra.mxu0 %v93
    %v270 = vpop.f32.mrf.mxu0
    %v271 = vadd.f32 0.0, %v270
    %272 = vmatmul.f32.gmra.mxu0 %v94
    %v273 = vpop.f32.mrf.mxu0
    %v274 = vadd.f32 0.0, %v273
    %275 = vmatmul.f32.gmra.mxu0 %v95
    %v276 = vpop.f32.mrf.mxu0
    %v277 = vadd.f32 0.0, %v276
    %278 = vmatmul.f32.gmra.mxu0 %v96
    %v279 = vpop.f32.mrf.mxu0
    %v280 = vadd.f32 0.0, %v279
    %281 = vmatmul.f32.gmra.mxu0 %v97
    %v282 = vpop.f32.mrf.mxu0
    %v283 = vadd.f32 0.0, %v282
    %284 = vmatmul.f32.gmra.mxu0 %v98
    %v285 = vpop.f32.mrf.mxu0
    %v286 = vadd.f32 0.0, %v285
    %287 = vmatmul.f32.gmra.mxu0 %v99
    %v288 = vpop.f32.mrf.mxu0
    %v289 = vadd.f32 0.0, %v288
    %290 = vmatmul.f32.gmra.mxu0 %v100
    %v291 = vpop.f32.mrf.mxu0
    %v292 = vadd.f32 0.0, %v291
    %293 = vmatmul.f32.gmra.mxu0 %v101
    %v294 = vpop.f32.mrf.mxu0
    %v295 = vadd.f32 0.0, %v294
    %296 = vmatmul.f32.gmra.mxu0 %v102
    %v297 = vpop.f32.mrf.mxu0
    %v298 = vadd.f32 0.0, %v297
    %299 = vmatmul.f32.gmra.mxu0 %v103
    %v300 = vpop.f32.mrf.mxu0
    %v301 = vadd.f32 0.0, %v300
    %302 = vmatmul.f32.gmra.mxu0 %v104
    %v303 = vpop.f32.mrf.mxu0
    %v304 = vadd.f32 0.0, %v303
    %305 = vmatmul.f32.gmra.mxu0 %v105
    %v306 = vpop.f32.mrf.mxu0
    %v307 = vadd.f32 0.0, %v306
    %308 = vmatmul.f32.gmra.mxu0 %v106
    %v309 = vpop.f32.mrf.mxu0
    %v310 = vadd.f32 0.0, %v309
    %311 = vmatmul.f32.gmra.mxu0 %v107
    %v312 = vpop.f32.mrf.mxu0
    %v313 = vadd.f32 0.0, %v312
    %314 = vmatmul.f32.gmra.mxu0 %v108
    %v315 = vpop.f32.mrf.mxu0
    %v316 = vadd.f32 0.0, %v315
    %317 = vmatmul.f32.gmra.mxu0 %v109
    %v318 = vpop.f32.mrf.mxu0
    %v319 = vadd.f32 0.0, %v318
    %320 = vmatmul.f32.gmra.mxu0 %v110
    %v321 = vpop.f32.mrf.mxu0
    %v322 = vadd.f32 0.0, %v321
    %323 = vmatmul.f32.gmra.mxu0 %v111
    %v324 = vpop.f32.mrf.mxu0
    %v325 = vadd.f32 0.0, %v324
    %326 = vmatmul.f32.gmra.mxu0 %v112
    %v327 = vpop.f32.mrf.mxu0
    %v328 = vadd.f32 0.0, %v327
    %329 = vmatmul.f32.gmra.mxu0 %v113
    %v330 = vpop.f32.mrf.mxu0
    %v331 = vadd.f32 0.0, %v330
    %332 = vmatmul.f32.gmra.mxu0 %v114
    %v333 = vpop.f32.mrf.mxu0
    %v334 = vadd.f32 0.0, %v333
    %335 = vmatmul.f32.gmra.mxu0 %v115
    %v336 = vpop.f32.mrf.mxu0
    %v337 = vadd.f32 0.0, %v336
    %338 = vmatmul.f32.gmra.mxu0 %v116
    %v339 = vpop.f32.mrf.mxu0
    %v340 = vadd.f32 0.0, %v339
    %341 = vdwg.mxu0
    %v342 = vld [vmem:[%s2] sm:$0x1]
    %v344 = vperm.slane %v342, 0
    %v346 = vmul.f32 %v151, %v344
    %v347 = vmul.f32 %v154, %v344
    %v348 = vmul.f32 %v157, %v344
    %v349 = vmul.f32 %v160, %v344
    %v350 = vmul.f32 %v163, %v344
    %v351 = vmul.f32 %v166, %v344
    %v352 = vmul.f32 %v169, %v344
    %v353 = vmul.f32 %v172, %v344
    %v354 = vmul.f32 %v175, %v344
    %v355 = vmul.f32 %v178, %v344
    %v356 = vmul.f32 %v181, %v344
    %v357 = vmul.f32 %v184, %v344
    %v358 = vmul.f32 %v187, %v344
    %v359 = vmul.f32 %v190, %v344
    %v360 = vmul.f32 %v193, %v344
    %v361 = vmul.f32 %v196, %v344
    %v362 = vmul.f32 %v199, %v344
    %v363 = vmul.f32 %v202, %v344
    %v364 = vmul.f32 %v205, %v344
    %v365 = vmul.f32 %v208, %v344
    %v366 = vmul.f32 %v211, %v344
    %v367 = vmul.f32 %v214, %v344
    %v368 = vmul.f32 %v217, %v344
    %v369 = vmul.f32 %v220, %v344
    %v370 = vmul.f32 %v223, %v344
    %v371 = vmul.f32 %v226, %v344
    %v372 = vmul.f32 %v229, %v344
    %v373 = vmul.f32 %v232, %v344
    %v374 = vmul.f32 %v235, %v344
    %v375 = vmul.f32 %v238, %v344
    %v376 = vmul.f32 %v241, %v344
    %v377 = vmul.f32 %v244, %v344
    %v378 = vmul.f32 %v247, %v344
    %v379 = vmul.f32 %v250, %v344
    %v380 = vmul.f32 %v253, %v344
    %v381 = vmul.f32 %v256, %v344
    %v382 = vmul.f32 %v259, %v344
    %v383 = vmul.f32 %v262, %v344
    %v384 = vmul.f32 %v265, %v344
    %v385 = vmul.f32 %v268, %v344
    %v386 = vmul.f32 %v271, %v344
    %v387 = vmul.f32 %v274, %v344
    %v388 = vmul.f32 %v277, %v344
    %v389 = vmul.f32 %v280, %v344
    %v390 = vmul.f32 %v283, %v344
    %v391 = vmul.f32 %v286, %v344
    %v392 = vmul.f32 %v289, %v344
    %v393 = vmul.f32 %v292, %v344
    %v394 = vmul.f32 %v295, %v344
    %v395 = vmul.f32 %v298, %v344
    %v396 = vmul.f32 %v301, %v344
    %v397 = vmul.f32 %v304, %v344
    %v398 = vmul.f32 %v307, %v344
    %v399 = vmul.f32 %v310, %v344
    %v400 = vmul.f32 %v313, %v344
    %v401 = vmul.f32 %v316, %v344
    %v402 = vmul.f32 %v319, %v344
    %v403 = vmul.f32 %v322, %v344
    %v404 = vmul.f32 %v325, %v344
    %v405 = vmul.f32 %v328, %v344
    %v406 = vmul.f32 %v331, %v344
    %v407 = vmul.f32 %v334, %v344
    %v408 = vmul.f32 %v337, %v344
    %v409 = vmul.f32 %v340, %v344
    %410 = vadd.xlane.f32.xlu0 %v346
    %v411 = vpop.xlane.xlu0 %410
    %412 = vadd.xlane.f32.xlu0 %v347
    %v413 = vpop.xlane.xlu0 %412
    %414 = vadd.xlane.f32.xlu0 %v348
    %v415 = vpop.xlane.xlu0 %414
    %416 = vadd.xlane.f32.xlu0 %v349
    %v417 = vpop.xlane.xlu0 %416
    %418 = vadd.xlane.f32.xlu0 %v350
    %v419 = vpop.xlane.xlu0 %418
    %420 = vadd.xlane.f32.xlu0 %v351
    %v421 = vpop.xlane.xlu0 %420
    %422 = vadd.xlane.f32.xlu0 %v352
    %v423 = vpop.xlane.xlu0 %422
    %424 = vadd.xlane.f32.xlu0 %v353
    %v425 = vpop.xlane.xlu0 %424
    %426 = vadd.xlane.f32.xlu0 %v354
    %v427 = vpop.xlane.xlu0 %426
    %428 = vadd.xlane.f32.xlu0 %v355
    %v429 = vpop.xlane.xlu0 %428
    %430 = vadd.xlane.f32.xlu0 %v356
    %v431 = vpop.xlane.xlu0 %430
    %432 = vadd.xlane.f32.xlu0 %v357
    %v433 = vpop.xlane.xlu0 %432
    %434 = vadd.xlane.f32.xlu0 %v358
    %v435 = vpop.xlane.xlu0 %434
    %436 = vadd.xlane.f32.xlu0 %v359
    %v437 = vpop.xlane.xlu0 %436
    %438 = vadd.xlane.f32.xlu0 %v360
    %v439 = vpop.xlane.xlu0 %438
    %440 = vadd.xlane.f32.xlu0 %v361
    %v441 = vpop.xlane.xlu0 %440
    %442 = vadd.xlane.f32.xlu0 %v362
    %v443 = vpop.xlane.xlu0 %442
    %444 = vadd.xlane.f32.xlu0 %v363
    %v445 = vpop.xlane.xlu0 %444
    %446 = vadd.xlane.f32.xlu0 %v364
    %v447 = vpop.xlane.xlu0 %446
    %448 = vadd.xlane.f32.xlu0 %v365
    %v449 = vpop.xlane.xlu0 %448
    %450 = vadd.xlane.f32.xlu0 %v366
    %v451 = vpop.xlane.xlu0 %450
    %452 = vadd.xlane.f32.xlu0 %v367
    %v453 = vpop.xlane.xlu0 %452
    %454 = vadd.xlane.f32.xlu0 %v368
    %v455 = vpop.xlane.xlu0 %454
    %456 = vadd.xlane.f32.xlu0 %v369
    %v457 = vpop.xlane.xlu0 %456
    %458 = vadd.xlane.f32.xlu0 %v370
    %v459 = vpop.xlane.xlu0 %458
    %460 = vadd.xlane.f32.xlu0 %v371
    %v461 = vpop.xlane.xlu0 %460
    %462 = vadd.xlane.f32.xlu0 %v372
    %v463 = vpop.xlane.xlu0 %462
    %464 = vadd.xlane.f32.xlu0 %v373
    %v465 = vpop.xlane.xlu0 %464
    %466 = vadd.xlane.f32.xlu0 %v374
    %v467 = vpop.xlane.xlu0 %466
    %468 = vadd.xlane.f32.xlu0 %v375
    %v469 = vpop.xlane.xlu0 %468
    %470 = vadd.xlane.f32.xlu0 %v376
    %v471 = vpop.xlane.xlu0 %470
    %472 = vadd.xlane.f32.xlu0 %v377
    %v473 = vpop.xlane.xlu0 %472
    %474 = vadd.xlane.f32.xlu0 %v378
    %v475 = vpop.xlane.xlu0 %474
    %476 = vadd.xlane.f32.xlu0 %v379
    %v477 = vpop.xlane.xlu0 %476
    %478 = vadd.xlane.f32.xlu0 %v380
    %v479 = vpop.xlane.xlu0 %478
    %480 = vadd.xlane.f32.xlu0 %v381
    %v481 = vpop.xlane.xlu0 %480
    %482 = vadd.xlane.f32.xlu0 %v382
    %v483 = vpop.xlane.xlu0 %482
    %484 = vadd.xlane.f32.xlu0 %v383
    %v485 = vpop.xlane.xlu0 %484
    %486 = vadd.xlane.f32.xlu0 %v384
    %v487 = vpop.xlane.xlu0 %486
    %488 = vadd.xlane.f32.xlu0 %v385
    %v489 = vpop.xlane.xlu0 %488
    %490 = vadd.xlane.f32.xlu0 %v386
    %v491 = vpop.xlane.xlu0 %490
    %492 = vadd.xlane.f32.xlu0 %v387
    %v493 = vpop.xlane.xlu0 %492
    %494 = vadd.xlane.f32.xlu0 %v388
    %v495 = vpop.xlane.xlu0 %494
    %496 = vadd.xlane.f32.xlu0 %v389
    %v497 = vpop.xlane.xlu0 %496
    %498 = vadd.xlane.f32.xlu0 %v390
    %v499 = vpop.xlane.xlu0 %498
    %500 = vadd.xlane.f32.xlu0 %v391
    %v501 = vpop.xlane.xlu0 %500
    %502 = vadd.xlane.f32.xlu0 %v392
    %v503 = vpop.xlane.xlu0 %502
    %504 = vadd.xlane.f32.xlu0 %v393
    %v505 = vpop.xlane.xlu0 %504
    %506 = vadd.xlane.f32.xlu0 %v394
    %v507 = vpop.xlane.xlu0 %506
    %508 = vadd.xlane.f32.xlu0 %v395
    %v509 = vpop.xlane.xlu0 %508
    %510 = vadd.xlane.f32.xlu0 %v396
    %v511 = vpop.xlane.xlu0 %510
    %512 = vadd.xlane.f32.xlu0 %v397
    %v513 = vpop.xlane.xlu0 %512
    %514 = vadd.xlane.f32.xlu0 %v398
    %v515 = vpop.xlane.xlu0 %514
    %516 = vadd.xlane.f32.xlu0 %v399
    %v517 = vpop.xlane.xlu0 %516
    %518 = vadd.xlane.f32.xlu0 %v400
    %v519 = vpop.xlane.xlu0 %518
    %520 = vadd.xlane.f32.xlu0 %v401
    %v521 = vpop.xlane.xlu0 %520
    %522 = vadd.xlane.f32.xlu0 %v402
    %v523 = vpop.xlane.xlu0 %522
    %524 = vadd.xlane.f32.xlu0 %v403
    %v525 = vpop.xlane.xlu0 %524
    %526 = vadd.xlane.f32.xlu0 %v404
    %v527 = vpop.xlane.xlu0 %526
    %528 = vadd.xlane.f32.xlu0 %v405
    %v529 = vpop.xlane.xlu0 %528
    %530 = vadd.xlane.f32.xlu0 %v406
    %v531 = vpop.xlane.xlu0 %530
    %532 = vadd.xlane.f32.xlu0 %v407
    %v533 = vpop.xlane.xlu0 %532
    %534 = vadd.xlane.f32.xlu0 %v408
    %v535 = vpop.xlane.xlu0 %534
    %536 = vadd.xlane.f32.xlu0 %v409
    %v537 = vpop.xlane.xlu0 %536
    %vm538 = vcmask 7168
    %539 = vst.msk [vmem:[%s5] sm:$0xff] %vm538, %v411
    %540 = vst.msk [vmem:[%s5 + $0x8] sm:$0xff] %vm538, %v413
    %541 = vst.msk [vmem:[%s5 + $0x10] sm:$0xff] %vm538, %v415
    %542 = vst.msk [vmem:[%s5 + $0x18] sm:$0xff] %vm538, %v417
    %543 = vst.msk [vmem:[%s5 + $0x20] sm:$0xff] %vm538, %v419
    %544 = vst.msk [vmem:[%s5 + $0x28] sm:$0xff] %vm538, %v421
    %545 = vst.msk [vmem:[%s5 + $0x30] sm:$0xff] %vm538, %v423
    %546 = vst.msk [vmem:[%s5 + $0x38] sm:$0xff] %vm538, %v425
    %547 = vst.msk [vmem:[%s5 + $0x40] sm:$0xff] %vm538, %v427
    %548 = vst.msk [vmem:[%s5 + $0x48] sm:$0xff] %vm538, %v429
    %549 = vst.msk [vmem:[%s5 + $0x50] sm:$0xff] %vm538, %v431
    %550 = vst.msk [vmem:[%s5 + $0x58] sm:$0xff] %vm538, %v433
    %551 = vst.msk [vmem:[%s5 + $0x60] sm:$0xff] %vm538, %v435
    %552 = vst.msk [vmem:[%s5 + $0x68] sm:$0xff] %vm538, %v437
    %553 = vst.msk [vmem:[%s5 + $0x70] sm:$0xff] %vm538, %v439
    %554 = vst.msk [vmem:[%s5 + $0x78] sm:$0xff] %vm538, %v441
    %555 = vst.msk [vmem:[%s5 + $0x80] sm:$0xff] %vm538, %v443
    %556 = vst.msk [vmem:[%s5 + $0x88] sm:$0xff] %vm538, %v445
    %557 = vst.msk [vmem:[%s5 + $0x90] sm:$0xff] %vm538, %v447
    %558 = vst.msk [vmem:[%s5 + $0x98] sm:$0xff] %vm538, %v449
    %559 = vst.msk [vmem:[%s5 + $0xa0] sm:$0xff] %vm538, %v451
    %560 = vst.msk [vmem:[%s5 + $0xa8] sm:$0xff] %vm538, %v453
    %561 = vst.msk [vmem:[%s5 + $0xb0] sm:$0xff] %vm538, %v455
    %562 = vst.msk [vmem:[%s5 + $0xb8] sm:$0xff] %vm538, %v457
    %563 = vst.msk [vmem:[%s5 + $0xc0] sm:$0xff] %vm538, %v459
    %564 = vst.msk [vmem:[%s5 + $0xc8] sm:$0xff] %vm538, %v461
    %565 = vst.msk [vmem:[%s5 + $0xd0] sm:$0xff] %vm538, %v463
    %566 = vst.msk [vmem:[%s5 + $0xd8] sm:$0xff] %vm538, %v465
    %567 = vst.msk [vmem:[%s5 + $0xe0] sm:$0xff] %vm538, %v467
    %568 = vst.msk [vmem:[%s5 + $0xe8] sm:$0xff] %vm538, %v469
    %569 = vst.msk [vmem:[%s5 + $0xf0] sm:$0xff] %vm538, %v471
    %570 = vst.msk [vmem:[%s5 + $0xf8] sm:$0xff] %vm538, %v473
    %571 = vst.msk [vmem:[%s5 + $0x100] sm:$0xff] %vm538, %v475
    %572 = vst.msk [vmem:[%s5 + $0x108] sm:$0xff] %vm538, %v477
    %573 = vst.msk [vmem:[%s5 + $0x110] sm:$0xff] %vm538, %v479
    %574 = vst.msk [vmem:[%s5 + $0x118] sm:$0xff] %vm538, %v481
    %575 = vst.msk [vmem:[%s5 + $0x120] sm:$0xff] %vm538, %v483
    %576 = vst.msk [vmem:[%s5 + $0x128] sm:$0xff] %vm538, %v485
    %577 = vst.msk [vmem:[%s5 + $0x130] sm:$0xff] %vm538, %v487
    %578 = vst.msk [vmem:[%s5 + $0x138] sm:$0xff] %vm538, %v489
    %579 = vst.msk [vmem:[%s5 + $0x140] sm:$0xff] %vm538, %v491
    %580 = vst.msk [vmem:[%s5 + $0x148] sm:$0xff] %vm538, %v493
    %581 = vst.msk [vmem:[%s5 + $0x150] sm:$0xff] %vm538, %v495
    %582 = vst.msk [vmem:[%s5 + $0x158] sm:$0xff] %vm538, %v497
    %583 = vst.msk [vmem:[%s5 + $0x160] sm:$0xff] %vm538, %v499
    %584 = vst.msk [vmem:[%s5 + $0x168] sm:$0xff] %vm538, %v501
    %585 = vst.msk [vmem:[%s5 + $0x170] sm:$0xff] %vm538, %v503
    %586 = vst.msk [vmem:[%s5 + $0x178] sm:$0xff] %vm538, %v505
    %587 = vst.msk [vmem:[%s5 + $0x180] sm:$0xff] %vm538, %v507
    %588 = vst.msk [vmem:[%s5 + $0x188] sm:$0xff] %vm538, %v509
    %589 = vst.msk [vmem:[%s5 + $0x190] sm:$0xff] %vm538, %v511
    %590 = vst.msk [vmem:[%s5 + $0x198] sm:$0xff] %vm538, %v513
    %591 = vst.msk [vmem:[%s5 + $0x1a0] sm:$0xff] %vm538, %v515
    %592 = vst.msk [vmem:[%s5 + $0x1a8] sm:$0xff] %vm538, %v517
    %593 = vst.msk [vmem:[%s5 + $0x1b0] sm:$0xff] %vm538, %v519
    %594 = vst.msk [vmem:[%s5 + $0x1b8] sm:$0xff] %vm538, %v521
    %595 = vst.msk [vmem:[%s5 + $0x1c0] sm:$0xff] %vm538, %v523
    %596 = vst.msk [vmem:[%s5 + $0x1c8] sm:$0xff] %vm538, %v525
    %597 = vst.msk [vmem:[%s5 + $0x1d0] sm:$0xff] %vm538, %v527
    %598 = vst.msk [vmem:[%s5 + $0x1d8] sm:$0xff] %vm538, %v529
    %599 = vst.msk [vmem:[%s5 + $0x1e0] sm:$0xff] %vm538, %v531
    %600 = vst.msk [vmem:[%s5 + $0x1e8] sm:$0xff] %vm538, %v533
    %601 = vst.msk [vmem:[%s5 + $0x1f0] sm:$0xff] %vm538, %v535
    %602 = vst.msk [vmem:[%s5 + $0x1f8] sm:$0xff] %vm538, %v537
    %v603 = vld [vmem:[%s3] sm:$0x1]
    %v605 = vperm.slane %v603, 0
    %v607 = vmul.f32 %v151, %v605
    %v608 = vmul.f32 %v154, %v605
    %v609 = vmul.f32 %v157, %v605
    %v610 = vmul.f32 %v160, %v605
    %v611 = vmul.f32 %v163, %v605
    %v612 = vmul.f32 %v166, %v605
    %v613 = vmul.f32 %v169, %v605
    %v614 = vmul.f32 %v172, %v605
    %v615 = vmul.f32 %v175, %v605
    %v616 = vmul.f32 %v178, %v605
    %v617 = vmul.f32 %v181, %v605
    %v618 = vmul.f32 %v184, %v605
    %v619 = vmul.f32 %v187, %v605
    %v620 = vmul.f32 %v190, %v605
    %v621 = vmul.f32 %v193, %v605
    %v622 = vmul.f32 %v196, %v605
    %v623 = vmul.f32 %v199, %v605
    %v624 = vmul.f32 %v202, %v605
    %v625 = vmul.f32 %v205, %v605
    %v626 = vmul.f32 %v208, %v605
    %v627 = vmul.f32 %v211, %v605
    %v628 = vmul.f32 %v214, %v605
    %v629 = vmul.f32 %v217, %v605
    %v630 = vmul.f32 %v220, %v605
    %v631 = vmul.f32 %v223, %v605
    %v632 = vmul.f32 %v226, %v605
    %v633 = vmul.f32 %v229, %v605
    %v634 = vmul.f32 %v232, %v605
    %v635 = vmul.f32 %v235, %v605
    %v636 = vmul.f32 %v238, %v605
    %v637 = vmul.f32 %v241, %v605
    %v638 = vmul.f32 %v244, %v605
    %v639 = vmul.f32 %v247, %v605
    %v640 = vmul.f32 %v250, %v605
    %v641 = vmul.f32 %v253, %v605
    %v642 = vmul.f32 %v256, %v605
    %v643 = vmul.f32 %v259, %v605
    %v644 = vmul.f32 %v262, %v605
    %v645 = vmul.f32 %v265, %v605
    %v646 = vmul.f32 %v268, %v605
    %v647 = vmul.f32 %v271, %v605
    %v648 = vmul.f32 %v274, %v605
    %v649 = vmul.f32 %v277, %v605
    %v650 = vmul.f32 %v280, %v605
    %v651 = vmul.f32 %v283, %v605
    %v652 = vmul.f32 %v286, %v605
    %v653 = vmul.f32 %v289, %v605
    %v654 = vmul.f32 %v292, %v605
    %v655 = vmul.f32 %v295, %v605
    %v656 = vmul.f32 %v298, %v605
    %v657 = vmul.f32 %v301, %v605
    %v658 = vmul.f32 %v304, %v605
    %v659 = vmul.f32 %v307, %v605
    %v660 = vmul.f32 %v310, %v605
    %v661 = vmul.f32 %v313, %v605
    %v662 = vmul.f32 %v316, %v605
    %v663 = vmul.f32 %v319, %v605
    %v664 = vmul.f32 %v322, %v605
    %v665 = vmul.f32 %v325, %v605
    %v666 = vmul.f32 %v328, %v605
    %v667 = vmul.f32 %v331, %v605
    %v668 = vmul.f32 %v334, %v605
    %v669 = vmul.f32 %v337, %v605
    %v670 = vmul.f32 %v340, %v605
    %671 = vadd.xlane.f32.xlu0 %v607
    %v672 = vpop.xlane.xlu0 %671
    %673 = vadd.xlane.f32.xlu0 %v608
    %v674 = vpop.xlane.xlu0 %673
    %675 = vadd.xlane.f32.xlu0 %v609
    %v676 = vpop.xlane.xlu0 %675
    %677 = vadd.xlane.f32.xlu0 %v610
    %v678 = vpop.xlane.xlu0 %677
    %679 = vadd.xlane.f32.xlu0 %v611
    %v680 = vpop.xlane.xlu0 %679
    %681 = vadd.xlane.f32.xlu0 %v612
    %v682 = vpop.xlane.xlu0 %681
    %683 = vadd.xlane.f32.xlu0 %v613
    %v684 = vpop.xlane.xlu0 %683
    %685 = vadd.xlane.f32.xlu0 %v614
    %v686 = vpop.xlane.xlu0 %685
    %687 = vadd.xlane.f32.xlu0 %v615
    %v688 = vpop.xlane.xlu0 %687
    %689 = vadd.xlane.f32.xlu0 %v616
    %v690 = vpop.xlane.xlu0 %689
    %691 = vadd.xlane.f32.xlu0 %v617
    %v692 = vpop.xlane.xlu0 %691
    %693 = vadd.xlane.f32.xlu0 %v618
    %v694 = vpop.xlane.xlu0 %693
    %695 = vadd.xlane.f32.xlu0 %v619
    %v696 = vpop.xlane.xlu0 %695
    %697 = vadd.xlane.f32.xlu0 %v620
    %v698 = vpop.xlane.xlu0 %697
    %699 = vadd.xlane.f32.xlu0 %v621
    %v700 = vpop.xlane.xlu0 %699
    %701 = vadd.xlane.f32.xlu0 %v622
    %v702 = vpop.xlane.xlu0 %701
    %703 = vadd.xlane.f32.xlu0 %v623
    %v704 = vpop.xlane.xlu0 %703
    %705 = vadd.xlane.f32.xlu0 %v624
    %v706 = vpop.xlane.xlu0 %705
    %707 = vadd.xlane.f32.xlu0 %v625
    %v708 = vpop.xlane.xlu0 %707
    %709 = vadd.xlane.f32.xlu0 %v626
    %v710 = vpop.xlane.xlu0 %709
    %711 = vadd.xlane.f32.xlu0 %v627
    %v712 = vpop.xlane.xlu0 %711
    %713 = vadd.xlane.f32.xlu0 %v628
    %v714 = vpop.xlane.xlu0 %713
    %715 = vadd.xlane.f32.xlu0 %v629
    %v716 = vpop.xlane.xlu0 %715
    %717 = vadd.xlane.f32.xlu0 %v630
    %v718 = vpop.xlane.xlu0 %717
    %719 = vadd.xlane.f32.xlu0 %v631
    %v720 = vpop.xlane.xlu0 %719
    %721 = vadd.xlane.f32.xlu0 %v632
    %v722 = vpop.xlane.xlu0 %721
    %723 = vadd.xlane.f32.xlu0 %v633
    %v724 = vpop.xlane.xlu0 %723
    %725 = vadd.xlane.f32.xlu0 %v634
    %v726 = vpop.xlane.xlu0 %725
    %727 = vadd.xlane.f32.xlu0 %v635
    %v728 = vpop.xlane.xlu0 %727
    %729 = vadd.xlane.f32.xlu0 %v636
    %v730 = vpop.xlane.xlu0 %729
    %731 = vadd.xlane.f32.xlu0 %v637
    %v732 = vpop.xlane.xlu0 %731
    %733 = vadd.xlane.f32.xlu0 %v638
    %v734 = vpop.xlane.xlu0 %733
    %735 = vadd.xlane.f32.xlu0 %v639
    %v736 = vpop.xlane.xlu0 %735
    %737 = vadd.xlane.f32.xlu0 %v640
    %v738 = vpop.xlane.xlu0 %737
    %739 = vadd.xlane.f32.xlu0 %v641
    %v740 = vpop.xlane.xlu0 %739
    %741 = vadd.xlane.f32.xlu0 %v642
    %v742 = vpop.xlane.xlu0 %741
    %743 = vadd.xlane.f32.xlu0 %v643
    %v744 = vpop.xlane.xlu0 %743
    %745 = vadd.xlane.f32.xlu0 %v644
    %v746 = vpop.xlane.xlu0 %745
    %747 = vadd.xlane.f32.xlu0 %v645
    %v748 = vpop.xlane.xlu0 %747
    %749 = vadd.xlane.f32.xlu0 %v646
    %v750 = vpop.xlane.xlu0 %749
    %751 = vadd.xlane.f32.xlu0 %v647
    %v752 = vpop.xlane.xlu0 %751
    %753 = vadd.xlane.f32.xlu0 %v648
    %v754 = vpop.xlane.xlu0 %753
    %755 = vadd.xlane.f32.xlu0 %v649
    %v756 = vpop.xlane.xlu0 %755
    %757 = vadd.xlane.f32.xlu0 %v650
    %v758 = vpop.xlane.xlu0 %757
    %759 = vadd.xlane.f32.xlu0 %v651
    %v760 = vpop.xlane.xlu0 %759
    %761 = vadd.xlane.f32.xlu0 %v652
    %v762 = vpop.xlane.xlu0 %761
    %763 = vadd.xlane.f32.xlu0 %v653
    %v764 = vpop.xlane.xlu0 %763
    %765 = vadd.xlane.f32.xlu0 %v654
    %v766 = vpop.xlane.xlu0 %765
    %767 = vadd.xlane.f32.xlu0 %v655
    %v768 = vpop.xlane.xlu0 %767
    %769 = vadd.xlane.f32.xlu0 %v656
    %v770 = vpop.xlane.xlu0 %769
    %771 = vadd.xlane.f32.xlu0 %v657
    %v772 = vpop.xlane.xlu0 %771
    %773 = vadd.xlane.f32.xlu0 %v658
    %v774 = vpop.xlane.xlu0 %773
    %775 = vadd.xlane.f32.xlu0 %v659
    %v776 = vpop.xlane.xlu0 %775
    %777 = vadd.xlane.f32.xlu0 %v660
    %v778 = vpop.xlane.xlu0 %777
    %779 = vadd.xlane.f32.xlu0 %v661
    %v780 = vpop.xlane.xlu0 %779
    %781 = vadd.xlane.f32.xlu0 %v662
    %v782 = vpop.xlane.xlu0 %781
    %783 = vadd.xlane.f32.xlu0 %v663
    %v784 = vpop.xlane.xlu0 %783
    %785 = vadd.xlane.f32.xlu0 %v664
    %v786 = vpop.xlane.xlu0 %785
    %787 = vadd.xlane.f32.xlu0 %v665
    %v788 = vpop.xlane.xlu0 %787
    %789 = vadd.xlane.f32.xlu0 %v666
    %v790 = vpop.xlane.xlu0 %789
    %791 = vadd.xlane.f32.xlu0 %v667
    %v792 = vpop.xlane.xlu0 %791
    %793 = vadd.xlane.f32.xlu0 %v668
    %v794 = vpop.xlane.xlu0 %793
    %795 = vadd.xlane.f32.xlu0 %v669
    %v796 = vpop.xlane.xlu0 %795
    %797 = vadd.xlane.f32.xlu0 %v670
    %v798 = vpop.xlane.xlu0 %797
    %799 = vst.msk [vmem:[%s6] sm:$0xff] %vm538, %v672
    %800 = vst.msk [vmem:[%s6 + $0x8] sm:$0xff] %vm538, %v674
    %801 = vst.msk [vmem:[%s6 + $0x10] sm:$0xff] %vm538, %v676
    %802 = vst.msk [vmem:[%s6 + $0x18] sm:$0xff] %vm538, %v678
    %803 = vst.msk [vmem:[%s6 + $0x20] sm:$0xff] %vm538, %v680
    %804 = vst.msk [vmem:[%s6 + $0x28] sm:$0xff] %vm538, %v682
    %805 = vst.msk [vmem:[%s6 + $0x30] sm:$0xff] %vm538, %v684
    %806 = vst.msk [vmem:[%s6 + $0x38] sm:$0xff] %vm538, %v686
    %807 = vst.msk [vmem:[%s6 + $0x40] sm:$0xff] %vm538, %v688
    %808 = vst.msk [vmem:[%s6 + $0x48] sm:$0xff] %vm538, %v690
    %809 = vst.msk [vmem:[%s6 + $0x50] sm:$0xff] %vm538, %v692
    %810 = vst.msk [vmem:[%s6 + $0x58] sm:$0xff] %vm538, %v694
    %811 = vst.msk [vmem:[%s6 + $0x60] sm:$0xff] %vm538, %v696
    %812 = vst.msk [vmem:[%s6 + $0x68] sm:$0xff] %vm538, %v698
    %813 = vst.msk [vmem:[%s6 + $0x70] sm:$0xff] %vm538, %v700
    %814 = vst.msk [vmem:[%s6 + $0x78] sm:$0xff] %vm538, %v702
    %815 = vst.msk [vmem:[%s6 + $0x80] sm:$0xff] %vm538, %v704
    %816 = vst.msk [vmem:[%s6 + $0x88] sm:$0xff] %vm538, %v706
    %817 = vst.msk [vmem:[%s6 + $0x90] sm:$0xff] %vm538, %v708
    %818 = vst.msk [vmem:[%s6 + $0x98] sm:$0xff] %vm538, %v710
    %819 = vst.msk [vmem:[%s6 + $0xa0] sm:$0xff] %vm538, %v712
    %820 = vst.msk [vmem:[%s6 + $0xa8] sm:$0xff] %vm538, %v714
    %821 = vst.msk [vmem:[%s6 + $0xb0] sm:$0xff] %vm538, %v716
    %822 = vst.msk [vmem:[%s6 + $0xb8] sm:$0xff] %vm538, %v718
    %823 = vst.msk [vmem:[%s6 + $0xc0] sm:$0xff] %vm538, %v720
    %824 = vst.msk [vmem:[%s6 + $0xc8] sm:$0xff] %vm538, %v722
    %825 = vst.msk [vmem:[%s6 + $0xd0] sm:$0xff] %vm538, %v724
    %826 = vst.msk [vmem:[%s6 + $0xd8] sm:$0xff] %vm538, %v726
    %827 = vst.msk [vmem:[%s6 + $0xe0] sm:$0xff] %vm538, %v728
    %828 = vst.msk [vmem:[%s6 + $0xe8] sm:$0xff] %vm538, %v730
    %829 = vst.msk [vmem:[%s6 + $0xf0] sm:$0xff] %vm538, %v732
    %830 = vst.msk [vmem:[%s6 + $0xf8] sm:$0xff] %vm538, %v734
    %831 = vst.msk [vmem:[%s6 + $0x100] sm:$0xff] %vm538, %v736
    %832 = vst.msk [vmem:[%s6 + $0x108] sm:$0xff] %vm538, %v738
    %833 = vst.msk [vmem:[%s6 + $0x110] sm:$0xff] %vm538, %v740
    %834 = vst.msk [vmem:[%s6 + $0x118] sm:$0xff] %vm538, %v742
    %835 = vst.msk [vmem:[%s6 + $0x120] sm:$0xff] %vm538, %v744
    %836 = vst.msk [vmem:[%s6 + $0x128] sm:$0xff] %vm538, %v746
    %837 = vst.msk [vmem:[%s6 + $0x130] sm:$0xff] %vm538, %v748
    %838 = vst.msk [vmem:[%s6 + $0x138] sm:$0xff] %vm538, %v750
    %839 = vst.msk [vmem:[%s6 + $0x140] sm:$0xff] %vm538, %v752
    %840 = vst.msk [vmem:[%s6 + $0x148] sm:$0xff] %vm538, %v754
    %841 = vst.msk [vmem:[%s6 + $0x150] sm:$0xff] %vm538, %v756
    %842 = vst.msk [vmem:[%s6 + $0x158] sm:$0xff] %vm538, %v758
    %843 = vst.msk [vmem:[%s6 + $0x160] sm:$0xff] %vm538, %v760
    %844 = vst.msk [vmem:[%s6 + $0x168] sm:$0xff] %vm538, %v762
    %845 = vst.msk [vmem:[%s6 + $0x170] sm:$0xff] %vm538, %v764
    %846 = vst.msk [vmem:[%s6 + $0x178] sm:$0xff] %vm538, %v766
    %847 = vst.msk [vmem:[%s6 + $0x180] sm:$0xff] %vm538, %v768
    %848 = vst.msk [vmem:[%s6 + $0x188] sm:$0xff] %vm538, %v770
    %849 = vst.msk [vmem:[%s6 + $0x190] sm:$0xff] %vm538, %v772
    %850 = vst.msk [vmem:[%s6 + $0x198] sm:$0xff] %vm538, %v774
    %851 = vst.msk [vmem:[%s6 + $0x1a0] sm:$0xff] %vm538, %v776
    %852 = vst.msk [vmem:[%s6 + $0x1a8] sm:$0xff] %vm538, %v778
    %853 = vst.msk [vmem:[%s6 + $0x1b0] sm:$0xff] %vm538, %v780
    %854 = vst.msk [vmem:[%s6 + $0x1b8] sm:$0xff] %vm538, %v782
    %855 = vst.msk [vmem:[%s6 + $0x1c0] sm:$0xff] %vm538, %v784
    %856 = vst.msk [vmem:[%s6 + $0x1c8] sm:$0xff] %vm538, %v786
    %857 = vst.msk [vmem:[%s6 + $0x1d0] sm:$0xff] %vm538, %v788
    %858 = vst.msk [vmem:[%s6 + $0x1d8] sm:$0xff] %vm538, %v790
    %859 = vst.msk [vmem:[%s6 + $0x1e0] sm:$0xff] %vm538, %v792
    %860 = vst.msk [vmem:[%s6 + $0x1e8] sm:$0xff] %vm538, %v794
    %861 = vst.msk [vmem:[%s6 + $0x1f0] sm:$0xff] %vm538, %v796
    %862 = vst.msk [vmem:[%s6 + $0x1f8] sm:$0xff] %vm538, %v798
    %v863 = vpack.c.bf16 %v151, %v151
    %v864 = vpack.c.bf16 %v154, %v154
    %v865 = vpack.c.bf16 %v157, %v157
    %v866 = vpack.c.bf16 %v160, %v160
    %v867 = vpack.c.bf16 %v163, %v163
    %v868 = vpack.c.bf16 %v166, %v166
    %v869 = vpack.c.bf16 %v169, %v169
    %v870 = vpack.c.bf16 %v172, %v172
    %v871 = vpack.c.bf16 %v175, %v175
    %v872 = vpack.c.bf16 %v178, %v178
    %v873 = vpack.c.bf16 %v181, %v181
    %v874 = vpack.c.bf16 %v184, %v184
    %v875 = vpack.c.bf16 %v187, %v187
    %v876 = vpack.c.bf16 %v190, %v190
    %v877 = vpack.c.bf16 %v193, %v193
    %v878 = vpack.c.bf16 %v196, %v196
    %v879 = vpack.c.bf16 %v199, %v199
    %v880 = vpack.c.bf16 %v202, %v202
    %v881 = vpack.c.bf16 %v205, %v205
    %v882 = vpack.c.bf16 %v208, %v208
    %v883 = vpack.c.bf16 %v211, %v211
    %v884 = vpack.c.bf16 %v214, %v214
    %v885 = vpack.c.bf16 %v217, %v217
    %v886 = vpack.c.bf16 %v220, %v220
    %v887 = vpack.c.bf16 %v223, %v223
    %v888 = vpack.c.bf16 %v226, %v226
    %v889 = vpack.c.bf16 %v229, %v229
    %v890 = vpack.c.bf16 %v232, %v232
    %v891 = vpack.c.bf16 %v235, %v235
    %v892 = vpack.c.bf16 %v238, %v238
    %v893 = vpack.c.bf16 %v241, %v241
    %v894 = vpack.c.bf16 %v244, %v244
    %v895 = vpack.c.bf16 %v247, %v247
    %v896 = vpack.c.bf16 %v250, %v250
    %v897 = vpack.c.bf16 %v253, %v253
    %v898 = vpack.c.bf16 %v256, %v256
    %v899 = vpack.c.bf16 %v259, %v259
    %v900 = vpack.c.bf16 %v262, %v262
    %v901 = vpack.c.bf16 %v265, %v265
    %v902 = vpack.c.bf16 %v268, %v268
    %v903 = vpack.c.bf16 %v271, %v271
    %v904 = vpack.c.bf16 %v274, %v274
    %v905 = vpack.c.bf16 %v277, %v277
    %v906 = vpack.c.bf16 %v280, %v280
    %v907 = vpack.c.bf16 %v283, %v283
    %v908 = vpack.c.bf16 %v286, %v286
    %v909 = vpack.c.bf16 %v289, %v289
    %v910 = vpack.c.bf16 %v292, %v292
    %v911 = vpack.c.bf16 %v295, %v295
    %v912 = vpack.c.bf16 %v298, %v298
    %v913 = vpack.c.bf16 %v301, %v301
    %v914 = vpack.c.bf16 %v304, %v304
    %v915 = vpack.c.bf16 %v307, %v307
    %v916 = vpack.c.bf16 %v310, %v310
    %v917 = vpack.c.bf16 %v313, %v313
    %v918 = vpack.c.bf16 %v316, %v316
    %v919 = vpack.c.bf16 %v319, %v319
    %v920 = vpack.c.bf16 %v322, %v322
    %v921 = vpack.c.bf16 %v325, %v325
    %v922 = vpack.c.bf16 %v328, %v328
    %v923 = vpack.c.bf16 %v331, %v331
    %v924 = vpack.c.bf16 %v334, %v334
    %v925 = vpack.c.bf16 %v337, %v337
    %v926 = vpack.c.bf16 %v340, %v340
    %927 = vst [vmem:[#allocation7] sm:$0xf] %v863
    %928 = vst [vmem:[#allocation7 + $0x4] sm:$0xf] %v864
    %929 = vst [vmem:[#allocation7 + $0x8] sm:$0xf] %v865
    %930 = vst [vmem:[#allocation7 + $0xc] sm:$0xf] %v866
    %931 = vst [vmem:[#allocation7 + $0x10] sm:$0xf] %v867
    %932 = vst [vmem:[#allocation7 + $0x14] sm:$0xf] %v868
    %933 = vst [vmem:[#allocation7 + $0x18] sm:$0xf] %v869
    %934 = vst [vmem:[#allocation7 + $0x1c] sm:$0xf] %v870
    %935 = vst [vmem:[#allocation7 + $0x20] sm:$0xf] %v871
    %936 = vst [vmem:[#allocation7 + $0x24] sm:$0xf] %v872
    %937 = vst [vmem:[#allocation7 + $0x28] sm:$0xf] %v873
    %938 = vst [vmem:[#allocation7 + $0x2c] sm:$0xf] %v874
    %939 = vst [vmem:[#allocation7 + $0x30] sm:$0xf] %v875
    %940 = vst [vmem:[#allocation7 + $0x34] sm:$0xf] %v876
    %941 = vst [vmem:[#allocation7 + $0x38] sm:$0xf] %v877
    %942 = vst [vmem:[#allocation7 + $0x3c] sm:$0xf] %v878
    %943 = vst [vmem:[#allocation7 + $0x40] sm:$0xf] %v879
    %944 = vst [vmem:[#allocation7 + $0x44] sm:$0xf] %v880
    %945 = vst [vmem:[#allocation7 + $0x48] sm:$0xf] %v881
    %946 = vst [vmem:[#allocation7 + $0x4c] sm:$0xf] %v882
    %947 = vst [vmem:[#allocation7 + $0x50] sm:$0xf] %v883
    %948 = vst [vmem:[#allocation7 + $0x54] sm:$0xf] %v884
    %949 = vst [vmem:[#allocation7 + $0x58] sm:$0xf] %v885
    %950 = vst [vmem:[#allocation7 + $0x5c] sm:$0xf] %v886
    %951 = vst [vmem:[#allocation7 + $0x60] sm:$0xf] %v887
    %952 = vst [vmem:[#allocation7 + $0x64] sm:$0xf] %v888
    %953 = vst [vmem:[#allocation7 + $0x68] sm:$0xf] %v889
    %954 = vst [vmem:[#allocation7 + $0x6c] sm:$0xf] %v890
    %955 = vst [vmem:[#allocation7 + $0x70] sm:$0xf] %v891
    %956 = vst [vmem:[#allocation7 + $0x74] sm:$0xf] %v892
    %957 = vst [vmem:[#allocation7 + $0x78] sm:$0xf] %v893
    %958 = vst [vmem:[#allocation7 + $0x7c] sm:$0xf] %v894
    %959 = vst [vmem:[#allocation7 + $0x80] sm:$0xf] %v895
    %960 = vst [vmem:[#allocation7 + $0x84] sm:$0xf] %v896
    %961 = vst [vmem:[#allocation7 + $0x88] sm:$0xf] %v897
    %962 = vst [vmem:[#allocation7 + $0x8c] sm:$0xf] %v898
    %963 = vst [vmem:[#allocation7 + $0x90] sm:$0xf] %v899
    %964 = vst [vmem:[#allocation7 + $0x94] sm:$0xf] %v900
    %965 = vst [vmem:[#allocation7 + $0x98] sm:$0xf] %v901
    %966 = vst [vmem:[#allocation7 + $0x9c] sm:$0xf] %v902
    %967 = vst [vmem:[#allocation7 + $0xa0] sm:$0xf] %v903
    %968 = vst [vmem:[#allocation7 + $0xa4] sm:$0xf] %v904
    %969 = vst [vmem:[#allocation7 + $0xa8] sm:$0xf] %v905
    %970 = vst [vmem:[#allocation7 + $0xac] sm:$0xf] %v906
    %971 = vst [vmem:[#allocation7 + $0xb0] sm:$0xf] %v907
    %972 = vst [vmem:[#allocation7 + $0xb4] sm:$0xf] %v908
    %973 = vst [vmem:[#allocation7 + $0xb8] sm:$0xf] %v909
    %974 = vst [vmem:[#allocation7 + $0xbc] sm:$0xf] %v910
    %975 = vst [vmem:[#allocation7 + $0xc0] sm:$0xf] %v911
    %976 = vst [vmem:[#allocation7 + $0xc4] sm:$0xf] %v912
    %977 = vst [vmem:[#allocation7 + $0xc8] sm:$0xf] %v913
    %978 = vst [vmem:[#allocation7 + $0xcc] sm:$0xf] %v914
    %979 = vst [vmem:[#allocation7 + $0xd0] sm:$0xf] %v915
    %980 = vst [vmem:[#allocation7 + $0xd4] sm:$0xf] %v916
    %981 = vst [vmem:[#allocation7 + $0xd8] sm:$0xf] %v917
    %982 = vst [vmem:[#allocation7 + $0xdc] sm:$0xf] %v918
    %983 = vst [vmem:[#allocation7 + $0xe0] sm:$0xf] %v919
    %984 = vst [vmem:[#allocation7 + $0xe4] sm:$0xf] %v920
    %985 = vst [vmem:[#allocation7 + $0xe8] sm:$0xf] %v921
    %986 = vst [vmem:[#allocation7 + $0xec] sm:$0xf] %v922
    %987 = vst [vmem:[#allocation7 + $0xf0] sm:$0xf] %v923
    %988 = vst [vmem:[#allocation7 + $0xf4] sm:$0xf] %v924
    %989 = vst [vmem:[#allocation7 + $0xf8] sm:$0xf] %v925
    %990 = vst [vmem:[#allocation7 + $0xfc] sm:$0xf] %v926
    // Predicated region
    $region26: #{tpu_custom_call.1} parent=1 // pred_check
      _
    $region27: #{tpu_custom_call.1} parent=1 // pred_check_branch
      %992 = sbr.rel (0) target = $region29
    $region28: #{tpu_custom_call.1} parent=1 // pred_region
      %994 = vsyncadd [#allocation4], 0
      %s995 = sshll.u32 [#allocation7], 4
      %s996 = int_to_ptr.vmem [resolvable:$true] %s995
      %s997 = sshll.u32 %s4, 4
      %s998 = int_to_ptr.hbm [resolvable:$true] %s997
      %1003 = dma.vmem_to_hbm [thread:$0]  %s996, 4096, %s998, [#allocation4], 64, 64, 4
    $region29: #{tpu_custom_call.1} parent=1 // pred_fallthru
      _
    // Predicated region
    $region30: #{tpu_custom_call.1} parent=1 // pred_check
      _
    $region31: #{tpu_custom_call.1} parent=1 // pred_check_branch
      %1005 = sbr.rel (0) target = $region33
    $region32: #{tpu_custom_call.1} parent=1 // pred_region
      _
    $region33: #{tpu_custom_call.1} parent=1 // pred_fallthru
      _
    // Predicated region
    $region34: #{tpu_custom_call.1} parent=1 // pred_check
      _
    $region35: #{tpu_custom_call.1} parent=1 // pred_check_branch
      %1007 = sbr.rel (0) target = $region37
    $region36: #{tpu_custom_call.1} parent=1 // pred_region
      _
    $region37: #{tpu_custom_call.1} parent=1 // pred_fallthru
      _
    // Predicated region
    $region38: #{tpu_custom_call.1} parent=1 // pred_check
      _
    $region39: #{tpu_custom_call.1} parent=1 // pred_check_branch
      %1009 = sbr.rel (0) target = $region41
    $region40: #{tpu_custom_call.1} parent=1 // pred_region
      %1011 = dma.done [#allocation4], 4096
    $region41: #{tpu_custom_call.1} parent=1 // pred_fallthru
      _
    // Predicated region
    $region42: #{tpu_custom_call.1} parent=1 // pred_check
      _
    $region43: #{tpu_custom_call.1} parent=1 // pred_check_branch
      %1013 = sbr.rel (0) target = $region45
    $region44: #{tpu_custom_call.1} parent=1 // pred_region
      _
    $region45: #{tpu_custom_call.1} parent=1 // pred_fallthru
      _
    // Predicated region
    $region46: #{tpu_custom_call.1} parent=1 // pred_check
      _
    $region47: #{tpu_custom_call.1} parent=1 // pred_check_branch
      %1015 = sbr.rel (0) target = $region49
    $region48: #{tpu_custom_call.1} parent=1 // pred_region
      _
    $region49: #{tpu_custom_call.1} parent=1 // pred_fallthru
      _
    %1016 = vsyncpa [#allocation3], 1
    %1017 = vsyncpa [#allocation6], 1
    %1018 = vsyncpa [#allocation4], 1

</llo_original>
